<compile_context>
chip_gen: v7x
topology: tpu7x:2x2x1
jax: 0.10.0
libtpu: 0.0.40
codegen_flags: <defaults>
</compile_context>

<pallas_src>
from functools import partial

import jax
import jax.numpy as jnp
from jax.experimental import pallas as pl
from jax.experimental.pallas import tpu as pltpu


def _drop_path_kernel(scale_ref, x_ref, o_ref):
    # scale_ref: (TM, 1), x_ref/o_ref: (TM, TN), all in the activation dtype.
    # Single per-row broadcast multiply on the VPU.
    o_ref[...] = x_ref[...] * scale_ref[...]


def _round_up(a: int, b: int) -> int:
    return pl.cdiv(a, b) * b


def _pick_tiles(B: int, N: int, itemsize: int):
    """Choose (TM, TN) aligned blocks targeting ~4 MiB per VMEM buffer."""
    SUB = {4: 8, 2: 16, 1: 32}.get(itemsize, 8)   # f32->8, bf16/f16->16, int8->32
    LANE = 128
    TARGET_BYTES = 4 * 1024 * 1024                # per buffer; 2x2x4MiB ~ 16 MiB total
    target_elems = TARGET_BYTES // itemsize

    # Lane (last) dim: full width rounded to 128, capped so a SUB-row tile fits.
    if N <= LANE:
        TN = N  # full array dim is always a legal block dim
    else:
        tn_cap = max(LANE, ((target_elems // SUB) // LANE) * LANE)
        TN = min(_round_up(N, LANE), tn_cap)

    # Row dim: fill the remaining budget, multiple of SUB, no larger than needed.
    TM = max(SUB, ((target_elems // TN) // SUB) * SUB)
    TM = min(TM, _round_up(B, SUB))

    # Keep >= 2 grid blocks along a parallel axis when possible (v7x megacore).
    if pl.cdiv(B, TM) * pl.cdiv(N, TN) < 2 and B > SUB:
        TM = max(SUB, _round_up(pl.cdiv(B, 2), SUB))

    return TM, TN


@partial(jax.jit, static_argnames=("p", "training"))
def seg_drop_path(x, seed=0, *, p: float = 0.0, training: bool = True):
    """Pallas implementation of SegDropPath.forward."""
    if p == 0.0 or not training:
        return x  # identity path, exactly as the PyTorch module

    keep_p = 1.0 - p
    orig_shape = x.shape
    B = x.shape[0]
    x2d = x.reshape(B, -1)          # [B, N], N = prod(non-batch dims)
    N = x2d.shape[1]
    dtype = x.dtype
    itemsize = jnp.dtype(dtype).itemsize

    TM, TN = _pick_tiles(B, N, itemsize)
    rows = pl.cdiv(B, TM)
    cols = pl.cdiv(N, TN)
    B_pad = rows * TM               # pad only the tiny scale vector

    # --- Per-sample Bernoulli (plain JAX, outside the kernel), in x.dtype. ---
    key = jax.random.PRNGKey(seed)
    r = jax.random.bernoulli(key, p=keep_p, shape=(B,)).astype(dtype)
    if keep_p > 0:                  # PyTorch guards the divide
        r = r / jnp.asarray(keep_p, dtype=dtype)
    scales = jnp.pad(r, (0, B_pad - B)).reshape(B_pad, 1)

    out = pl.pallas_call(
        _drop_path_kernel,
        out_shape=jax.ShapeDtypeStruct((B, N), dtype),
        grid=(rows, cols),
        in_specs=[
            pl.BlockSpec((TM, 1), lambda i, j: (i, 0)),    # per-sample scales
            pl.BlockSpec((TM, TN), lambda i, j: (i, j)),   # activation tile
        ],
        out_specs=pl.BlockSpec((TM, TN), lambda i, j: (i, j)),
        input_output_aliases={1: 0},  # reuse the activation buffer for the output
        cost_estimate=pl.CostEstimate(
            flops=B * N,
            transcendentals=0,
            bytes_accessed=2 * B * N * itemsize + B_pad * itemsize,
        ),
        compiler_params=pltpu.CompilerParams(
            dimension_semantics=("parallel", "parallel"),
            vmem_limit_bytes=32 * 1024 * 1024,
        ),
    )(scales, x2d)

    return out.reshape(orig_shape)


if __name__ == "__main__":
    key = jax.random.PRNGKey(0)
    # Small NCHW input consistent with how SegDropPath is used inside SegFormer.
    x = jax.random.normal(key, (2, 4, 16, 16), dtype=jnp.float32)

    p = 0.5
    keep_p = 1.0 - p

    # Training path: per-sample mask + 1/keep_p scaling.
    y_train = jax.block_until_ready(seg_drop_path(x, seed=0, p=p, training=True))

    # Eval path: identity.
    y_eval = jax.block_until_ready(seg_drop_path(x, p=p, training=False))

    # Correctness checks.
    assert y_train.shape == x.shape and y_train.dtype == x.dtype
    assert jnp.array_equal(y_eval, x)

    xr = x.reshape(x.shape[0], -1)
    yr = y_train.reshape(x.shape[0], -1)
    for b in range(x.shape[0]):
        dropped = bool(jnp.all(yr[b] == 0.0))
        kept = bool(jnp.allclose(yr[b], xr[b] / keep_p, atol=1e-5))
        assert dropped or kept, f"row {b} is neither dropped nor scaled-kept"

    print("KERNEL_OK")
</pallas_src>

<mosaic_0001>
module attributes {stable_mosaic.version = 11 : i64} {
  func.func @_drop_path_kernel(%arg0: i32, %arg1: i32, %arg2: memref<8x1xf32, #tpu.memory_space<vmem>>, %arg3: memref<8x1024xf32, #tpu.memory_space<vmem>>, %arg4: memref<8x1024xf32, #tpu.memory_space<vmem>>) attributes {dimension_semantics = [#tpu.dimension_semantics<parallel>, #tpu.dimension_semantics<parallel>], iteration_bounds = array<i64: 1, 1>, scalar_prefetch = 0 : i64, scratch_operands = 0 : i64, tpu.core_type = #tpu.core_type<tc>, window_params = [{transform_indices = @transform_0, window_bounds = array<i64: 8, 1>}, {transform_indices = @transform_1, window_bounds = array<i64: 8, 1024>}, {transform_indices = @transform_2, window_bounds = array<i64: 8, 1024>}]} {
    %c0 = arith.constant 0 : index
    %c0_0 = arith.constant 0 : index
    %0 = vector.load %arg3[%c0, %c0_0] : memref<8x1024xf32, #tpu.memory_space<vmem>>, vector<8x1024xf32>
    %c0_1 = arith.constant 0 : index
    %c0_2 = arith.constant 0 : index
    %1 = vector.load %arg2[%c0_1, %c0_2] : memref<8x1xf32, #tpu.memory_space<vmem>>, vector<8x1xf32>
    %2 = vector.broadcast %1 : vector<8x1xf32> to vector<8x1024xf32>
    %3 = arith.mulf %0, %2 : vector<8x1024xf32>
    %c0_3 = arith.constant 0 : index
    %c0_4 = arith.constant 0 : index
    %4 = vector.load %arg4[%c0_3, %c0_4] : memref<8x1024xf32, #tpu.memory_space<vmem>>, vector<8x1024xf32>
    tpu.vector_store %arg4[%c0_3, %c0_4], %3 {strides = array<i32>} : memref<8x1024xf32, #tpu.memory_space<vmem>>, vector<8x1024xf32>,
    return
  }
  func.func @transform_0(%arg0: i32, %arg1: i32) -> (i32, i32) {
    %c0_i32 = arith.constant 0 : i32
    %c0_i32_0 = arith.constant 0 : i32
    return %arg0, %c0_i32 : i32, i32
  }
  func.func @transform_1(%arg0: i32, %arg1: i32) -> (i32, i32) {
    %c0_i32 = arith.constant 0 : i32
    return %arg0, %arg1 : i32, i32
  }
  func.func @transform_2(%arg0: i32, %arg1: i32) -> (i32, i32) {
    %c0_i32 = arith.constant 0 : i32
    return %arg0, %arg1 : i32, i32
  }
}

</mosaic_0001>

<llo_original>
// kernel: seg_drop_path.1
$region0: #{seg_drop_path.1}
  #allocation0 [shape = 'u32[]', space=smem, size = 0x4, offset = 0x4, fixed_abs, tag = 'smem constant byte address 0x4 - core index']
  #allocation1 [shape = 'u32[144,128]{1,0:T(1,128)}', space=vmem, size = 0x12000, scoped, tag = 'internal scratch']
  %s0 = inlined_call_operand.vmem [shape: f32[8,1], index: 0, kind: input, shape index: {}]
  %s1 = inlined_call_operand.vmem [shape: f32[2,1024], index: 1, kind: input, shape index: {}, may-alias: {1,2}]
  %s2 = inlined_call_operand.vmem [shape: f32[2,1024], index: 2, kind: output, shape index: {}, may-alias: {1,2}]
  %s3 = sld [smem:[#allocation0]]
  $region37: #{seg_drop_path.1} parent=0
    _
  %s5 = ssub.s32 1, %s3
  %s6 = scalar_select 0, %s5, %s3
  $region1: #{seg_drop_path.1} parent=0
    #allocation2 [shape = 'u8[32768]{0}', space=vmem, size = 0x8000, scoped, tag = 'output window, operand 0, single buffered']
    // Predicated region
    $region2: #{seg_drop_path.1} parent=1 // pred_check
      _
    $region3: #{seg_drop_path.1} parent=1 // pred_check_branch
      %8 = sbr.rel (0) target = $region5
    $region4: #{seg_drop_path.1} parent=1 // pred_region
      _
    $region5: #{seg_drop_path.1} parent=1 // pred_fallthru
      _
    // Predicated region
    $region6: #{seg_drop_path.1} parent=1 // pred_check
      _
    $region7: #{seg_drop_path.1} parent=1 // pred_check_branch
      %10 = sbr.rel (0) target = $region9
    $region8: #{seg_drop_path.1} parent=1 // pred_region
      _
    $region9: #{seg_drop_path.1} parent=1 // pred_fallthru
      _
    %v11 = vld [vmem:[%s1] sm:$0xff]
    %v12 = vld [vmem:[%s1 + $0x8] sm:$0xff]
    %v13 = vld [vmem:[%s1 + $0x10] sm:$0xff]
    %v14 = vld [vmem:[%s1 + $0x18] sm:$0xff]
    %v15 = vld [vmem:[%s1 + $0x20] sm:$0xff]
    %v16 = vld [vmem:[%s1 + $0x28] sm:$0xff]
    %v17 = vld [vmem:[%s1 + $0x30] sm:$0xff]
    %v18 = vld [vmem:[%s1 + $0x38] sm:$0xff]
    %v19 = vld [vmem:[%s0] sm:$0xff]
    %21 = vset.pattern.permute.xlu0 0
    %22 = vperm.xlu0 %21, %v19
    %v23 = vpop.permute.xlu0 %22
    %v25 = vunpack.c.l.s4 269488144
    %v26 = vunpack.c.0.s8 %v25
    %v27 = vlaneseq
    %v28 = vshrl.u32 %v27, 7
    %v29 = vsub.s32 %v26, %v28
    %v30 = vrot.slane %v23, %v29
    %v32 = vunpack.c.l.s4 842150450
    %v33 = vunpack.c.0.s8 %v32
    %v34 = vlaneseq
    %v35 = vshrl.u32 %v34, 7
    %v36 = vsub.s32 %v33, %v35
    %v37 = vrot.slane %v23, %v36
    %v39 = vunpack.c.l.s4 1414812756
    %v40 = vunpack.c.0.s8 %v39
    %v41 = vlaneseq
    %v42 = vshrl.u32 %v41, 7
    %v43 = vsub.s32 %v40, %v42
    %v44 = vrot.slane %v23, %v43
    %v46 = vunpack.c.l.s4 1987475062
    %v47 = vunpack.c.0.s8 %v46
    %v48 = vlaneseq
    %v49 = vshrl.u32 %v48, 7
    %v50 = vsub.s32 %v47, %v49
    %v51 = vrot.slane %v23, %v50
    %v56 = vmul.f32 %v11, %v30
    %v57 = vmul.f32 %v12, %v30
    %v58 = vmul.f32 %v13, %v37
    %v59 = vmul.f32 %v14, %v37
    %v60 = vmul.f32 %v15, %v44
    %v61 = vmul.f32 %v16, %v44
    %v62 = vmul.f32 %v17, %v51
    %v63 = vmul.f32 %v18, %v51
    %64 = vst [vmem:[#allocation2] sm:$0xff] %v56
    %65 = vst [vmem:[#allocation2 + $0x8] sm:$0xff] %v57
    %66 = vst [vmem:[#allocation2 + $0x10] sm:$0xff] %v58
    %67 = vst [vmem:[#allocation2 + $0x18] sm:$0xff] %v59
    %68 = vst [vmem:[#allocation2 + $0x20] sm:$0xff] %v60
    %69 = vst [vmem:[#allocation2 + $0x28] sm:$0xff] %v61
    %70 = vst [vmem:[#allocation2 + $0x30] sm:$0xff] %v62
    %71 = vst [vmem:[#allocation2 + $0x38] sm:$0xff] %v63
    // Predicated region
    $region10: #{seg_drop_path.1} parent=1 // pred_check
      _
    $region11: #{seg_drop_path.1} parent=1 // pred_check_branch
      %73 = sbr.rel (0) target = $region13
    $region12: #{seg_drop_path.1} parent=1 // pred_region
      // Predicated region
      $region14: #{seg_drop_path.1} parent=12 // pred_check
        _
      $region15: #{seg_drop_path.1} parent=12 // pred_check_branch
        %75 = sbr.rel (0) target = $region17
      $region16: #{seg_drop_path.1} parent=12 // pred_region
        // Predicated region
        $region18: #{seg_drop_path.1} parent=16 // pred_check
          _
        $region19: #{seg_drop_path.1} parent=16 // pred_check_branch
          %77 = sbr.rel (0) target = $region21
        $region20: #{seg_drop_path.1} parent=16 // pred_region
          loop: start=0, step=1, limit=1
          $region22: #{seg_drop_path.1} parent=20 // loop_pre_header
            _
          $region23: #{seg_drop_path.1} parent=20 // loop_header
            %s79 = sphi 0, %s83
            %p80 = scmp.ge.s32.totalorder %s79, 1
            %s84 = sphi [#allocation2], [#allocation2]
            %s85 = sphi %s2, %s2
          $region24: #{seg_drop_path.1} parent=20 // loop_header_branch
            %82 = sbr.rel (%p80) target = $region28
          $region25: #{seg_drop_path.1} parent=20 // loop_body
            %v86 = vld [vmem:[%s84] sm:$0xff]
            %87 = vst [vmem:[%s85] sm:$0xff] %v86
            %v88 = vld [vmem:[%s84 + $0x8] sm:$0xff]
            %89 = vst [vmem:[%s85 + $0x8] sm:$0xff] %v88
          $region26: #{seg_drop_path.1} parent=20 // loop_footer
            %s83 = sadd.s32 1, %s79
          $region27: #{seg_drop_path.1} parent=20 // loop_footer_branch
            %78 = sbr.rel target = $region23
          $region28: #{seg_drop_path.1} parent=20 // loop_exit
            _
        $region21: #{seg_drop_path.1} parent=16 // pred_fallthru
          _
        // Predicated region
        $region29: #{seg_drop_path.1} parent=16 // pred_check
          _
        $region30: #{seg_drop_path.1} parent=16 // pred_check_branch
          %91 = sbr.rel target = $region32
        $region31: #{seg_drop_path.1} parent=16 // pred_region
          _
        $region32: #{seg_drop_path.1} parent=16 // pred_fallthru
          _
      $region17: #{seg_drop_path.1} parent=12 // pred_fallthru
        _
      %92 = vnop
    $region13: #{seg_drop_path.1} parent=1 // pred_fallthru
      _
    // Predicated region
    $region33: #{seg_drop_path.1} parent=1 // pred_check
      _
    $region34: #{seg_drop_path.1} parent=1 // pred_check_branch
      %94 = sbr.rel (0) target = $region36
    $region35: #{seg_drop_path.1} parent=1 // pred_region
      _
    $region36: #{seg_drop_path.1} parent=1 // pred_fallthru
      _

</llo_original>
